<compile_context>
chip_gen: v6e
topology: v6e:2x2x1
jax: 0.10.0
libtpu: 0.0.40
codegen_flags: <defaults>
</compile_context>

<pallas_src>
import functools

import jax
import jax.numpy as jnp
from jax import lax
from jax.experimental import pallas as pl
from jax.experimental.pallas import tpu as pltpu

T_SOFTMAX = 0.07
NORM_EPS = 1e-12       # torch.nn.functional.normalize default eps
_MAX_TK = 2048         # max reduction-tile width (rows of W per grid step)


def _cdiv(a, b):
    return (a + b - 1) // b


def _round_up(x, m):
    return _cdiv(x, m) * m


# ---------------------------------------------------------------------------
# Fused kernel: encode [q;k] stacked, normalize, logits = (q/|q|)·(k/|k|)/T
# ---------------------------------------------------------------------------
def _fused_contrast_kernel(x_ref, w_ref, out_ref, logits_ref, *,
                           n_pad, feat_dim, nk_pad, inv_t):
    k_step = pl.program_id(0)

    @pl.when(k_step == 0)
    def _init():
        out_ref[...] = jnp.zeros_like(out_ref)

    # One stacked [q; k] matmul per K step: bf16 operands, f32 MXU accumulation
    # directly into the resident output block (no scratch accumulators).
    out_ref[...] += jnp.dot(x_ref[...], w_ref[...],
                            preferred_element_type=jnp.float32)

    @pl.when(k_step == pl.num_programs(0) - 1)
    def _finalize():
        acc = out_ref[...]
        accq = acc[:n_pad, :]      # static, 8-sublane-aligned row split
        acck = acc[n_pad:, :]

        # Keep only the feature columns for normalization / contrast matmul.
        if feat_dim % 128 == 0:
            fq = accq[:, :feat_dim]          # tile-aligned slice, no mask work
            fk = acck[:, :feat_dim]
        else:
            col = lax.broadcasted_iota(jnp.int32, accq.shape, dimension=1)
            feat_mask = col < feat_dim
            fq = jnp.where(feat_mask, accq, 0.0)
            fk = jnp.where(feat_mask, acck, 0.0)

        # 1/max(||f||, eps) == rsqrt(max(||f||^2, eps^2)) (EUP slot); fold 1/T
        # into the q scale so no post-matmul elementwise pass over the logits.
        # NOTE: padded batch rows have zero features -> big_scale * 0 == 0,
        # finite and sliced away outside; keep it that way if adding biases.
        q_ss = jnp.sum(fq * fq, axis=-1, keepdims=True)
        k_ss = jnp.sum(fk * fk, axis=-1, keepdims=True)
        q_scale = lax.rsqrt(jnp.maximum(q_ss, NORM_EPS * NORM_EPS)) * inv_t
        k_scale = lax.rsqrt(jnp.maximum(k_ss, NORM_EPS * NORM_EPS))
        qn = (fq * q_scale).astype(jnp.bfloat16)
        kn = (fk * k_scale).astype(jnp.bfloat16)

        # Zero-pad kn rows so the logits store is lane-dense (>=128-wide
        # unmasked vst); the extra zero rows are a few spare MXU columns.
        if nk_pad > n_pad:
            kn = jnp.concatenate(
                [kn, jnp.zeros((nk_pad - n_pad, kn.shape[1]), kn.dtype)],
                axis=0)

        # einsum('nc,mc->nm'): contract the feature dim of BOTH operands.
        logits_ref[...] = lax.dot_general(
            qn, kn,
            dimension_numbers=(((1,), (1,)), ((), ())),
            preferred_element_type=jnp.float32)


# ---------------------------------------------------------------------------
# Jitted forward implementation (weights already fused / padded / bf16).
# ---------------------------------------------------------------------------
@functools.partial(
    jax.jit,
    static_argnames=("d_in", "feat_dim", "n_cls", "tk", "k_tiles",
                     "d_out_pad", "inv_t"))
def _contrast_forward_impl(im_q, im_k, w_fused, *, d_in, feat_dim, n_cls,
                           tk, k_tiles, d_out_pad, inv_t):
    n = im_q.shape[0]
    d_out = feat_dim + n_cls
    k_pad = tk * k_tiles
    n_pad = max(_round_up(n, 16), 16)       # bf16 sublane granularity
    nk_pad = max(_round_up(n, 128), 128)    # lane-dense logits columns

    # Flatten NCHW row-major (torch .view(N, -1)); cast to bf16 once so the
    # kernel DMAs half the bytes. Stack [q; k] into a single LHS.
    xq = im_q.reshape(n, -1).astype(jnp.bfloat16)
    xk = im_k.reshape(n, -1).astype(jnp.bfloat16)
    if n == n_pad and d_in == k_pad:
        x_stack = jnp.concatenate([xq, xk], axis=0)       # no padding needed
    else:
        x_stack = jnp.zeros((2 * n_pad, k_pad), jnp.bfloat16)
        x_stack = x_stack.at[:n, :d_in].set(xq)
        x_stack = x_stack.at[n_pad:n_pad + n, :d_in].set(xk)

    flops = (2 * (2 * n_pad) * k_pad * d_out_pad        # stacked encoder matmul
             + 2 * n_pad * nk_pad * d_out_pad)          # contrast matmul
    bytes_accessed = ((x_stack.size + w_fused.size) * 2
                      + (2 * n_pad * d_out_pad + n_pad * nk_pad) * 4)

    w_spec_kwargs = {}
    if k_tiles >= 3:
        # Deeper weight prefetch only when there are enough K steps to hide.
        w_spec_kwargs["pipeline_mode"] = pl.Buffered(3)

    out_feat, logits = pl.pallas_call(
        functools.partial(_fused_contrast_kernel, n_pad=n_pad,
                          feat_dim=feat_dim, nk_pad=nk_pad, inv_t=inv_t),
        out_shape=(
            jax.ShapeDtypeStruct((2 * n_pad, d_out_pad), jnp.float32),
            jax.ShapeDtypeStruct((n_pad, nk_pad), jnp.float32),
        ),
        grid_spec=pltpu.PrefetchScalarGridSpec(
            num_scalar_prefetch=0,
            grid=(k_tiles,),
            in_specs=[
                pl.BlockSpec((2 * n_pad, tk), lambda k: (0, k)),
                pl.BlockSpec((tk, d_out_pad), lambda k: (k, 0),
                             **w_spec_kwargs),
            ],
            out_specs=(
                pl.BlockSpec((2 * n_pad, d_out_pad), lambda k: (0, 0)),
                pl.BlockSpec((n_pad, nk_pad), lambda k: (0, 0)),
            ),
        ),
        compiler_params=pltpu.CompilerParams(
            dimension_semantics=("arbitrary",),       # K is a reduction axis
            vmem_limit_bytes=32 * 1024 * 1024,        # fits v5e/v6e/v7x scoped
        ),
        cost_estimate=pl.CostEstimate(
            flops=flops, transcendentals=2 * n_pad,
            bytes_accessed=bytes_accessed),
    )(x_stack, w_fused)

    # Strip padding / split encoder outputs outside the kernel (cheap in XLA).
    yq = out_feat[:n, feat_dim:d_out]
    yk = out_feat[n_pad:n_pad + n, feat_dim:d_out]
    return logits[:n, :n], yq, yk


# ---------------------------------------------------------------------------
# Setup: fuse/pad the weights ONCE, return a forward(im_q, im_k) callable.
# ---------------------------------------------------------------------------
def make_contrast(wf, wy, T=T_SOFTMAX):
    d_in, feat_dim = wf.shape
    n_cls = wy.shape[1]
    d_out = feat_dim + n_cls
    d_out_pad = _round_up(d_out, 128)

    # Reduction tiling: as few / as big K tiles as possible (128-aligned,
    # <= ~2048 rows per step) with minimal zero padding.
    k_tiles = max(1, _cdiv(d_in, _MAX_TK))
    tk = _round_up(_cdiv(d_in, k_tiles), 128)
    k_pad = tk * k_tiles

    # Fused lane-dense weight [Wf | Wy], bf16, built once (not per call).
    w_fused = jnp.zeros((k_pad, d_out_pad), jnp.bfloat16)
    w_fused = w_fused.at[:d_in, :feat_dim].set(wf.astype(jnp.bfloat16))
    w_fused = w_fused.at[:d_in, feat_dim:d_out].set(wy.astype(jnp.bfloat16))
    w_fused = jax.block_until_ready(w_fused)

    inv_t = 1.0 / float(T)

    def forward(im_q, im_k):
        return _contrast_forward_impl(
            im_q, im_k, w_fused,
            d_in=d_in, feat_dim=feat_dim, n_cls=n_cls,
            tk=tk, k_tiles=k_tiles, d_out_pad=d_out_pad, inv_t=inv_t)

    return forward


# ---------------------------------------------------------------------------
# Pure-JAX reference (same math as the torch module, mirroring the kernel's
# bf16 quantization points so the comparison is tight).
# ---------------------------------------------------------------------------
def _ref_forward(im_q, im_k, wf, wy):
    n = im_q.shape[0]
    bf = lambda a: a.astype(jnp.bfloat16).astype(jnp.float32)
    hp = jax.lax.Precision.HIGHEST
    xq, xk = bf(im_q.reshape(n, -1)), bf(im_k.reshape(n, -1))
    wf32, wy32 = bf(wf), bf(wy)
    fq = jnp.dot(xq, wf32, precision=hp)
    yq = jnp.dot(xq, wy32, precision=hp)
    fk = jnp.dot(xk, wf32, precision=hp)
    yk = jnp.dot(xk, wy32, precision=hp)
    q_scale = (1.0 / jnp.maximum(jnp.linalg.norm(fq, axis=1, keepdims=True),
                                 NORM_EPS)) / T_SOFTMAX
    k_scale = 1.0 / jnp.maximum(jnp.linalg.norm(fk, axis=1, keepdims=True),
                                NORM_EPS)
    qn = bf(fq * q_scale)
    kn = bf(fk * k_scale)
    logits = jnp.dot(qn, kn.T, precision=hp)
    return logits, yq, yk


if __name__ == "__main__":
    batch, chans, spatial = 2, 4, 16
    feat_dim, n_cls = 32, 8
    d_in = chans * spatial * spatial

    key = jax.random.PRNGKey(0)
    k_q, k_k, k_wf, k_wy = jax.random.split(key, 4)
    im_q = jax.random.normal(k_q, (batch, chans, spatial, spatial), dtype=jnp.float32)
    im_k = jax.random.normal(k_k, (batch, chans, spatial, spatial), dtype=jnp.float32)
    wf = jax.random.normal(k_wf, (d_in, feat_dim), dtype=jnp.float32) * 0.02
    wy = jax.random.normal(k_wy, (d_in, n_cls), dtype=jnp.float32) * 0.02

    forward = make_contrast(wf, wy)
    logits, yq, yk = forward(im_q, im_k)
    jax.block_until_ready((logits, yq, yk))

    r_logits, r_yq, r_yk = _ref_forward(im_q, im_k, wf, wy)
    assert logits.shape == (batch, batch)
    assert yq.shape == (batch, n_cls) and yk.shape == (batch, n_cls)
    assert jnp.allclose(logits, r_logits, atol=2e-2, rtol=2e-2)
    assert jnp.allclose(yq, r_yq, atol=2e-2, rtol=2e-2)
    assert jnp.allclose(yk, r_yk, atol=2e-2, rtol=2e-2)

    print("KERNEL_OK")
</pallas_src>

<mosaic_0001>
module attributes {stable_mosaic.version = 11 : i64} {
  func.func @_fused_contrast_kernel(%arg0: i32, %arg1: memref<32x1024xbf16, #tpu.memory_space<vmem>>, %arg2: memref<1024x128xbf16, #tpu.memory_space<vmem>>, %arg3: memref<32x128xf32, #tpu.memory_space<vmem>>, %arg4: memref<16x128xf32, #tpu.memory_space<vmem>>) attributes {dimension_semantics = [#tpu.dimension_semantics<arbitrary>], iteration_bounds = array<i64: 1>, scalar_prefetch = 0 : i64, scratch_operands = 0 : i64, tpu.core_type = #tpu.core_type<tc>, window_params = [{transform_indices = @transform_0, window_bounds = array<i64: 32, 1024>}, {transform_indices = @transform_1, window_bounds = array<i64: 1024, 128>}, {pipeline_mode = #tpu.pipeline_mode<synchronous>, transform_indices = @transform_2, window_bounds = array<i64: 32, 128>}, {pipeline_mode = #tpu.pipeline_mode<synchronous>, transform_indices = @transform_3, window_bounds = array<i64: 16, 128>}]} {
    %c0_i32 = arith.constant 0 : i32
    %0 = arith.cmpi eq, %arg0, %c0_i32 : i32
    %1 = arith.extui %0 : i1 to i32
    %c0_i32_0 = arith.constant 0 : i32
    %2 = arith.cmpi ne, %1, %c0_i32_0 : i32
    scf.if %2 {
      %cst_10 = arith.constant 0.000000e+00 : f32
      %12 = vector.broadcast %cst_10 : f32 to vector<32x128xf32>
      %c0_11 = arith.constant 0 : index
      %c0_12 = arith.constant 0 : index
      %13 = vector.load %arg3[%c0_11, %c0_12] : memref<32x128xf32, #tpu.memory_space<vmem>>, vector<32x128xf32>
      tpu.vector_store %arg3[%c0_11, %c0_12], %12 {strides = array<i32>} : memref<32x128xf32, #tpu.memory_space<vmem>>, vector<32x128xf32>,
    } else {
    }
    %c0 = arith.constant 0 : index
    %c0_1 = arith.constant 0 : index
    %3 = vector.load %arg3[%c0, %c0_1] : memref<32x128xf32, #tpu.memory_space<vmem>>, vector<32x128xf32>
    %c0_2 = arith.constant 0 : index
    %c0_3 = arith.constant 0 : index
    %4 = vector.load %arg1[%c0_2, %c0_3] : memref<32x1024xbf16, #tpu.memory_space<vmem>>, vector<32x1024xbf16>
    %c0_4 = arith.constant 0 : index
    %c0_5 = arith.constant 0 : index
    %5 = vector.load %arg2[%c0_4, %c0_5] : memref<1024x128xbf16, #tpu.memory_space<vmem>>, vector<1024x128xbf16>
    %cst = arith.constant dense<0.000000e+00> : vector<32x128xf32>
    %6 = tpu.matmul %4, %5, %cst {dimension_numbers = #tpu.dot_dimension_numbers<[1], [0], [0], [1], [0, 0, 1, 1], [], []>} : vector<32x1024xbf16>, vector<1024x128xbf16>, vector<32x128xf32> -> vector<32x128xf32>
    %7 = arith.addf %3, %6 : vector<32x128xf32>
    %c0_6 = arith.constant 0 : index
    %c0_7 = arith.constant 0 : index
    %8 = vector.load %arg3[%c0_6, %c0_7] : memref<32x128xf32, #tpu.memory_space<vmem>>, vector<32x128xf32>
    tpu.vector_store %arg3[%c0_6, %c0_7], %7 {strides = array<i32>} : memref<32x128xf32, #tpu.memory_space<vmem>>, vector<32x128xf32>,
    %c0_i32_8 = arith.constant 0 : i32
    %9 = arith.cmpi eq, %arg0, %c0_i32_8 : i32
    %10 = arith.extui %9 : i1 to i32
    %c0_i32_9 = arith.constant 0 : i32
    %11 = arith.cmpi ne, %10, %c0_i32_9 : i32
    scf.if %11 {
      %c0_10 = arith.constant 0 : index
      %c0_11 = arith.constant 0 : index
      %12 = vector.load %arg3[%c0_10, %c0_11] : memref<32x128xf32, #tpu.memory_space<vmem>>, vector<32x128xf32>
      %13 = vector.extract_strided_slice %12 {offsets = [0, 0], sizes = [16, 128], strides = [1, 1]} : vector<32x128xf32> to vector<16x128xf32>
      %14 = vector.extract_strided_slice %12 {offsets = [16, 0], sizes = [16, 128], strides = [1, 1]} : vector<32x128xf32> to vector<16x128xf32>
      %15 = tpu.iota {dimensions = array<i32: 1>} : vector<16x128xi32>
      %c32_i32 = arith.constant 32 : i32
      %16 = vector.broadcast %c32_i32 : i32 to vector<16x128xi32>
      %17 = arith.cmpi slt, %15, %16 : vector<16x128xi32>
      %cst_12 = arith.constant 0.000000e+00 : f32
      %18 = vector.broadcast %cst_12 : f32 to vector<16x128xf32>
      %19 = arith.select %17, %13, %18 : vector<16x128xi1>, vector<16x128xf32>
      %cst_13 = arith.constant 0.000000e+00 : f32
      %20 = vector.broadcast %cst_13 : f32 to vector<16x128xf32>
      %21 = arith.select %17, %14, %20 : vector<16x128xi1>, vector<16x128xf32>
      %22 = arith.mulf %19, %19 : vector<16x128xf32>
      %cst_14 = arith.constant dense<0.000000e+00> : vector<16xf32>
      %23 = vector.multi_reduction <add>, %22, %cst_14 [1] : vector<16x128xf32> to vector<16xf32>
      %24 = vector.shape_cast %23 : vector<16xf32> to vector<16x1xf32>
      %25 = arith.mulf %21, %21 : vector<16x128xf32>
      %cst_15 = arith.constant dense<0.000000e+00> : vector<16xf32>
      %26 = vector.multi_reduction <add>, %25, %cst_15 [1] : vector<16x128xf32> to vector<16xf32>
      %27 = vector.shape_cast %26 : vector<16xf32> to vector<16x1xf32>
      %cst_16 = arith.constant 1.000000e-24 : f32
      %28 = vector.broadcast %cst_16 : f32 to vector<16x1xf32>
      %29 = arith.maximumf %24, %28 : vector<16x1xf32>
      %30 = math.rsqrt %29 : vector<16x1xf32>
      %cst_17 = arith.constant 14.2857141 : f32
      %31 = vector.broadcast %cst_17 : f32 to vector<16x1xf32>
      %32 = arith.mulf %30, %31 : vector<16x1xf32>
      %cst_18 = arith.constant 1.000000e-24 : f32
      %33 = vector.broadcast %cst_18 : f32 to vector<16x1xf32>
      %34 = arith.maximumf %27, %33 : vector<16x1xf32>
      %35 = math.rsqrt %34 : vector<16x1xf32>
      %36 = vector.broadcast %32 : vector<16x1xf32> to vector<16x128xf32>
      %37 = arith.mulf %19, %36 : vector<16x128xf32>
      %38 = arith.truncf %37 : vector<16x128xf32> to vector<16x128xbf16>
      %39 = vector.broadcast %35 : vector<16x1xf32> to vector<16x128xf32>
      %40 = arith.mulf %21, %39 : vector<16x128xf32>
      %41 = arith.truncf %40 : vector<16x128xf32> to vector<16x128xbf16>
      %cst_19 = arith.constant 0.000000e+00 : bf16
      %42 = vector.broadcast %cst_19 : bf16 to vector<112x128xbf16>
      %43 = tpu.concatenate %41, %42 in 0 : vector<16x128xbf16>, vector<112x128xbf16> -> vector<128x128xbf16>
      %cst_20 = arith.constant dense<0.000000e+00> : vector<16x128xf32>
      %44 = tpu.matmul %38, %43, %cst_20 {dimension_numbers = #tpu.dot_dimension_numbers<[1], [1], [0], [0], [0, 0, 1, 0], [], []>} : vector<16x128xbf16>, vector<128x128xbf16>, vector<16x128xf32> -> vector<16x128xf32>
      %c0_21 = arith.constant 0 : index
      %c0_22 = arith.constant 0 : index
      %45 = vector.load %arg4[%c0_21, %c0_22] : memref<16x128xf32, #tpu.memory_space<vmem>>, vector<16x128xf32>
      tpu.vector_store %arg4[%c0_21, %c0_22], %44 {strides = array<i32>} : memref<16x128xf32, #tpu.memory_space<vmem>>, vector<16x128xf32>,
    } else {
    }
    return
  }
  func.func @transform_0(%arg0: i32) -> (i32, i32) {
    %c0_i32 = arith.constant 0 : i32
    %c0_i32_0 = arith.constant 0 : i32
    return %c0_i32, %arg0 : i32, i32
  }
  func.func @transform_1(%arg0: i32) -> (i32, i32) {
    %c0_i32 = arith.constant 0 : i32
    %c0_i32_0 = arith.constant 0 : i32
    return %arg0, %c0_i32 : i32, i32
  }
  func.func @transform_2(%arg0: i32) -> (i32, i32) {
    %c0_i32 = arith.constant 0 : i32
    %c0_i32_0 = arith.constant 0 : i32
    %c0_i32_1 = arith.constant 0 : i32
    return %c0_i32, %c0_i32_0 : i32, i32
  }
  func.func @transform_3(%arg0: i32) -> (i32, i32) {
    %c0_i32 = arith.constant 0 : i32
    %c0_i32_0 = arith.constant 0 : i32
    %c0_i32_1 = arith.constant 0 : i32
    return %c0_i32, %c0_i32_0 : i32, i32
  }
}

</mosaic_0001>

<llo_original>
// kernel: _contrast_forward_impl.1
$region0: #{_contrast_forward_impl.1}
  #allocation0 [shape = 'u32[]', space=smem, size = 0x4, offset = 0x4, fixed_abs, tag = 'smem constant byte address 0x4 - core index']
  #allocation1 [shape = 'u32[144,128]{1,0:T(1,128)}', space=vmem, size = 0x12000, scoped, tag = 'internal scratch']
  %s0 = inlined_call_operand.vmem [shape: bf16[32,1024], index: 0, kind: input, shape index: {}]
  %s1 = inlined_call_operand.vmem [shape: bf16[1024,128], index: 1, kind: input, shape index: {}]
  %s2 = inlined_call_operand.vmem [shape: f32[32,128], index: 2, kind: output, shape index: {0}]
  %s3 = inlined_call_operand.vmem [shape: f32[16,128], index: 3, kind: output, shape index: {1}]
  %4 = xla_tuple %s2, %s3
  %s5 = sld [smem:[#allocation0]]
  $region34: #{_contrast_forward_impl.1} parent=0
    _
  %s7 = ssub.s32 1, %s5
  %s8 = scalar_select 0, %s7, %s5
  // Predicated region
  $region2: #{_contrast_forward_impl.1} parent=0 // pred_check
    _
  $region3: #{_contrast_forward_impl.1} parent=0 // pred_check_branch
    %10 = sbr.rel (0) target = $region5
  $region4: #{_contrast_forward_impl.1} parent=0 // pred_region
    _
  $region5: #{_contrast_forward_impl.1} parent=0 // pred_fallthru
    _
  // Predicated region
  $region6: #{_contrast_forward_impl.1} parent=0 // pred_check
    _
  $region7: #{_contrast_forward_impl.1} parent=0 // pred_check_branch
    %12 = sbr.rel (0) target = $region9
  $region8: #{_contrast_forward_impl.1} parent=0 // pred_region
    _
  $region9: #{_contrast_forward_impl.1} parent=0 // pred_fallthru
    _
  %p14 = scmp.eq.s32.totalorder 0, 0
  // Predicated region
  $region10: #{_contrast_forward_impl.1} parent=0 // pred_check
    %p15 = pneg %p14
  $region11: #{_contrast_forward_impl.1} parent=0 // pred_check_branch
    %17 = sbr.rel (%p15) target = $region13
  $region12: #{_contrast_forward_impl.1} parent=0 // pred_region
    %18 = vst [vmem:[%s2] sm:$0xff] 0.0
    %19 = vst [vmem:[%s2 + $0x8] sm:$0xff] 0.0
    %20 = vst [vmem:[%s2 + $0x10] sm:$0xff] 0.0
    %21 = vst [vmem:[%s2 + $0x18] sm:$0xff] 0.0
  $region13: #{_contrast_forward_impl.1} parent=0 // pred_fallthru
    _
  %v22 = vld [vmem:[%s2] sm:$0xff]
  %v23 = vld [vmem:[%s2 + $0x8] sm:$0xff]
  %v24 = vld [vmem:[%s2 + $0x10] sm:$0xff]
  %v25 = vld [vmem:[%s2 + $0x18] sm:$0xff]
  %v26 = vld [vmem:[%s0] sm:$0xff]
  %v27 = vld [vmem:[%s0 + $0x8] sm:$0xff]
  %v28 = vld [vmem:[%s0 + $0x10] sm:$0xff]
  %v29 = vld [vmem:[%s0 + $0x18] sm:$0xff]
  %v30 = vld [vmem:[%s0 + $0x20] sm:$0xff]
  %v31 = vld [vmem:[%s0 + $0x28] sm:$0xff]
  %v32 = vld [vmem:[%s0 + $0x30] sm:$0xff]
  %v33 = vld [vmem:[%s0 + $0x38] sm:$0xff]
  %v34 = vld [vmem:[%s0 + $0x40] sm:$0xff]
  %v35 = vld [vmem:[%s0 + $0x48] sm:$0xff]
  %v36 = vld [vmem:[%s0 + $0x50] sm:$0xff]
  %v37 = vld [vmem:[%s0 + $0x58] sm:$0xff]
  %v38 = vld [vmem:[%s0 + $0x60] sm:$0xff]
  %v39 = vld [vmem:[%s0 + $0x68] sm:$0xff]
  %v40 = vld [vmem:[%s0 + $0x70] sm:$0xff]
  %v41 = vld [vmem:[%s0 + $0x78] sm:$0xff]
  %v42 = vld [vmem:[%s1] sm:$0xf]
  %v43 = vld [vmem:[%s1 + $0x4] sm:$0xf]
  %v44 = vld [vmem:[%s1 + $0x8] sm:$0xf]
  %v45 = vld [vmem:[%s1 + $0xc] sm:$0xf]
  %v46 = vld [vmem:[%s1 + $0x10] sm:$0xf]
  %v47 = vld [vmem:[%s1 + $0x14] sm:$0xf]
  %v48 = vld [vmem:[%s1 + $0x18] sm:$0xf]
  %v49 = vld [vmem:[%s1 + $0x1c] sm:$0xf]
  %v50 = vld [vmem:[%s1 + $0x20] sm:$0xf]
  %v51 = vld [vmem:[%s1 + $0x24] sm:$0xf]
  %v52 = vld [vmem:[%s1 + $0x28] sm:$0xf]
  %v53 = vld [vmem:[%s1 + $0x2c] sm:$0xf]
  %v54 = vld [vmem:[%s1 + $0x30] sm:$0xf]
  %v55 = vld [vmem:[%s1 + $0x34] sm:$0xf]
  %v56 = vld [vmem:[%s1 + $0x38] sm:$0xf]
  %v57 = vld [vmem:[%s1 + $0x3c] sm:$0xf]
  %v58 = vld [vmem:[%s1 + $0x40] sm:$0xf]
  %v59 = vld [vmem:[%s1 + $0x44] sm:$0xf]
  %v60 = vld [vmem:[%s1 + $0x48] sm:$0xf]
  %v61 = vld [vmem:[%s1 + $0x4c] sm:$0xf]
  %v62 = vld [vmem:[%s1 + $0x50] sm:$0xf]
  %v63 = vld [vmem:[%s1 + $0x54] sm:$0xf]
  %v64 = vld [vmem:[%s1 + $0x58] sm:$0xf]
  %v65 = vld [vmem:[%s1 + $0x5c] sm:$0xf]
  %v66 = vld [vmem:[%s1 + $0x60] sm:$0xf]
  %v67 = vld [vmem:[%s1 + $0x64] sm:$0xf]
  %v68 = vld [vmem:[%s1 + $0x68] sm:$0xf]
  %v69 = vld [vmem:[%s1 + $0x6c] sm:$0xf]
  %v70 = vld [vmem:[%s1 + $0x70] sm:$0xf]
  %v71 = vld [vmem:[%s1 + $0x74] sm:$0xf]
  %v72 = vld [vmem:[%s1 + $0x78] sm:$0xf]
  %v73 = vld [vmem:[%s1 + $0x7c] sm:$0xf]
  %v74 = vld [vmem:[%s1 + $0x80] sm:$0xf]
  %v75 = vld [vmem:[%s1 + $0x84] sm:$0xf]
  %v76 = vld [vmem:[%s1 + $0x88] sm:$0xf]
  %v77 = vld [vmem:[%s1 + $0x8c] sm:$0xf]
  %v78 = vld [vmem:[%s1 + $0x90] sm:$0xf]
  %v79 = vld [vmem:[%s1 + $0x94] sm:$0xf]
  %v80 = vld [vmem:[%s1 + $0x98] sm:$0xf]
  %v81 = vld [vmem:[%s1 + $0x9c] sm:$0xf]
  %v82 = vld [vmem:[%s1 + $0xa0] sm:$0xf]
  %v83 = vld [vmem:[%s1 + $0xa4] sm:$0xf]
  %v84 = vld [vmem:[%s1 + $0xa8] sm:$0xf]
  %v85 = vld [vmem:[%s1 + $0xac] sm:$0xf]
  %v86 = vld [vmem:[%s1 + $0xb0] sm:$0xf]
  %v87 = vld [vmem:[%s1 + $0xb4] sm:$0xf]
  %v88 = vld [vmem:[%s1 + $0xb8] sm:$0xf]
  %v89 = vld [vmem:[%s1 + $0xbc] sm:$0xf]
  %v90 = vld [vmem:[%s1 + $0xc0] sm:$0xf]
  %v91 = vld [vmem:[%s1 + $0xc4] sm:$0xf]
  %v92 = vld [vmem:[%s1 + $0xc8] sm:$0xf]
  %v93 = vld [vmem:[%s1 + $0xcc] sm:$0xf]
  %v94 = vld [vmem:[%s1 + $0xd0] sm:$0xf]
  %v95 = vld [vmem:[%s1 + $0xd4] sm:$0xf]
  %v96 = vld [vmem:[%s1 + $0xd8] sm:$0xf]
  %v97 = vld [vmem:[%s1 + $0xdc] sm:$0xf]
  %v98 = vld [vmem:[%s1 + $0xe0] sm:$0xf]
  %v99 = vld [vmem:[%s1 + $0xe4] sm:$0xf]
  %v100 = vld [vmem:[%s1 + $0xe8] sm:$0xf]
  %v101 = vld [vmem:[%s1 + $0xec] sm:$0xf]
  %v102 = vld [vmem:[%s1 + $0xf0] sm:$0xf]
  %v103 = vld [vmem:[%s1 + $0xf4] sm:$0xf]
  %v104 = vld [vmem:[%s1 + $0xf8] sm:$0xf]
  %v105 = vld [vmem:[%s1 + $0xfc] sm:$0xf]
  %v106 = vld [vmem:[%s1 + $0x100] sm:$0xf]
  %v107 = vld [vmem:[%s1 + $0x104] sm:$0xf]
  %v108 = vld [vmem:[%s1 + $0x108] sm:$0xf]
  %v109 = vld [vmem:[%s1 + $0x10c] sm:$0xf]
  %v110 = vld [vmem:[%s1 + $0x110] sm:$0xf]
  %v111 = vld [vmem:[%s1 + $0x114] sm:$0xf]
  %v112 = vld [vmem:[%s1 + $0x118] sm:$0xf]
  %v113 = vld [vmem:[%s1 + $0x11c] sm:$0xf]
  %v114 = vld [vmem:[%s1 + $0x120] sm:$0xf]
  %v115 = vld [vmem:[%s1 + $0x124] sm:$0xf]
  %v116 = vld [vmem:[%s1 + $0x128] sm:$0xf]
  %v117 = vld [vmem:[%s1 + $0x12c] sm:$0xf]
  %v118 = vld [vmem:[%s1 + $0x130] sm:$0xf]
  %v119 = vld [vmem:[%s1 + $0x134] sm:$0xf]
  %v120 = vld [vmem:[%s1 + $0x138] sm:$0xf]
  %v121 = vld [vmem:[%s1 + $0x13c] sm:$0xf]
  %v122 = vld [vmem:[%s1 + $0x140] sm:$0xf]
  %v123 = vld [vmem:[%s1 + $0x144] sm:$0xf]
  %v124 = vld [vmem:[%s1 + $0x148] sm:$0xf]
  %v125 = vld [vmem:[%s1 + $0x14c] sm:$0xf]
  %v126 = vld [vmem:[%s1 + $0x150] sm:$0xf]
  %v127 = vld [vmem:[%s1 + $0x154] sm:$0xf]
  %v128 = vld [vmem:[%s1 + $0x158] sm:$0xf]
  %v129 = vld [vmem:[%s1 + $0x15c] sm:$0xf]
  %v130 = vld [vmem:[%s1 + $0x160] sm:$0xf]
  %v131 = vld [vmem:[%s1 + $0x164] sm:$0xf]
  %v132 = vld [vmem:[%s1 + $0x168] sm:$0xf]
  %v133 = vld [vmem:[%s1 + $0x16c] sm:$0xf]
  %v134 = vld [vmem:[%s1 + $0x170] sm:$0xf]
  %v135 = vld [vmem:[%s1 + $0x174] sm:$0xf]
  %v136 = vld [vmem:[%s1 + $0x178] sm:$0xf]
  %v137 = vld [vmem:[%s1 + $0x17c] sm:$0xf]
  %v138 = vld [vmem:[%s1 + $0x180] sm:$0xf]
  %v139 = vld [vmem:[%s1 + $0x184] sm:$0xf]
  %v140 = vld [vmem:[%s1 + $0x188] sm:$0xf]
  %v141 = vld [vmem:[%s1 + $0x18c] sm:$0xf]
  %v142 = vld [vmem:[%s1 + $0x190] sm:$0xf]
  %v143 = vld [vmem:[%s1 + $0x194] sm:$0xf]
  %v144 = vld [vmem:[%s1 + $0x198] sm:$0xf]
  %v145 = vld [vmem:[%s1 + $0x19c] sm:$0xf]
  %v146 = vld [vmem:[%s1 + $0x1a0] sm:$0xf]
  %v147 = vld [vmem:[%s1 + $0x1a4] sm:$0xf]
  %v148 = vld [vmem:[%s1 + $0x1a8] sm:$0xf]
  %v149 = vld [vmem:[%s1 + $0x1ac] sm:$0xf]
  %v150 = vld [vmem:[%s1 + $0x1b0] sm:$0xf]
  %v151 = vld [vmem:[%s1 + $0x1b4] sm:$0xf]
  %v152 = vld [vmem:[%s1 + $0x1b8] sm:$0xf]
  %v153 = vld [vmem:[%s1 + $0x1bc] sm:$0xf]
  %v154 = vld [vmem:[%s1 + $0x1c0] sm:$0xf]
  %v155 = vld [vmem:[%s1 + $0x1c4] sm:$0xf]
  %v156 = vld [vmem:[%s1 + $0x1c8] sm:$0xf]
  %v157 = vld [vmem:[%s1 + $0x1cc] sm:$0xf]
  %v158 = vld [vmem:[%s1 + $0x1d0] sm:$0xf]
  %v159 = vld [vmem:[%s1 + $0x1d4] sm:$0xf]
  %v160 = vld [vmem:[%s1 + $0x1d8] sm:$0xf]
  %v161 = vld [vmem:[%s1 + $0x1dc] sm:$0xf]
  %v162 = vld [vmem:[%s1 + $0x1e0] sm:$0xf]
  %v163 = vld [vmem:[%s1 + $0x1e4] sm:$0xf]
  %v164 = vld [vmem:[%s1 + $0x1e8] sm:$0xf]
  %v165 = vld [vmem:[%s1 + $0x1ec] sm:$0xf]
  %v166 = vld [vmem:[%s1 + $0x1f0] sm:$0xf]
  %v167 = vld [vmem:[%s1 + $0x1f4] sm:$0xf]
  %v168 = vld [vmem:[%s1 + $0x1f8] sm:$0xf]
  %v169 = vld [vmem:[%s1 + $0x1fc] sm:$0xf]
  %v186 = vunpack.c.l.b16 %v26
  %v187 = vunpack.c.h.b16 %v26
  %v188 = vunpack.c.l.b16 %v27
  %v189 = vunpack.c.h.b16 %v27
  %v190 = vunpack.c.l.b16 %v28
  %v191 = vunpack.c.h.b16 %v28
  %v192 = vunpack.c.l.b16 %v29
  %v193 = vunpack.c.h.b16 %v29
  %v194 = vunpack.c.l.b16 %v30
  %v195 = vunpack.c.h.b16 %v30
  %v196 = vunpack.c.l.b16 %v31
  %v197 = vunpack.c.h.b16 %v31
  %v198 = vunpack.c.l.b16 %v32
  %v199 = vunpack.c.h.b16 %v32
  %v200 = vunpack.c.l.b16 %v33
  %v201 = vunpack.c.h.b16 %v33
  %v202 = vunpack.c.l.b16 %v34
  %v203 = vunpack.c.h.b16 %v34
  %v204 = vunpack.c.l.b16 %v35
  %v205 = vunpack.c.h.b16 %v35
  %v206 = vunpack.c.l.b16 %v36
  %v207 = vunpack.c.h.b16 %v36
  %v208 = vunpack.c.l.b16 %v37
  %v209 = vunpack.c.h.b16 %v37
  %v210 = vunpack.c.l.b16 %v38
  %v211 = vunpack.c.h.b16 %v38
  %v212 = vunpack.c.l.b16 %v39
  %v213 = vunpack.c.h.b16 %v39
  %v214 = vunpack.c.l.b16 %v40
  %v215 = vunpack.c.h.b16 %v40
  %v216 = vunpack.c.l.b16 %v41
  %v217 = vunpack.c.h.b16 %v41
  %v218 = vpack.c.b16 %v194, %v186
  %v219 = vpack.c.b16 %v195, %v187
  %v220 = vpack.c.b16 %v196, %v188
  %v221 = vpack.c.b16 %v197, %v189
  %v222 = vpack.c.b16 %v198, %v190
  %v223 = vpack.c.b16 %v199, %v191
  %v224 = vpack.c.b16 %v200, %v192
  %v225 = vpack.c.b16 %v201, %v193
  %v226 = vpack.c.b16 %v210, %v202
  %v227 = vpack.c.b16 %v211, %v203
  %v228 = vpack.c.b16 %v212, %v204
  %v229 = vpack.c.b16 %v213, %v205
  %v230 = vpack.c.b16 %v214, %v206
  %v231 = vpack.c.b16 %v215, %v207
  %v232 = vpack.c.b16 %v216, %v208
  %v233 = vpack.c.b16 %v217, %v209
  %v378 = vunpack.c.l.b16 %v42
  %v379 = vunpack.c.l.b16 %v43
  %v380 = vunpack.c.l.b16 %v44
  %v381 = vunpack.c.l.b16 %v45
  %v382 = vunpack.c.l.b16 %v46
  %v383 = vunpack.c.l.b16 %v47
  %v384 = vunpack.c.l.b16 %v48
  %v385 = vunpack.c.l.b16 %v49
  %v386 = vunpack.c.l.b16 %v50
  %v387 = vunpack.c.l.b16 %v51
  %v388 = vunpack.c.l.b16 %v52
  %v389 = vunpack.c.l.b16 %v53
  %v390 = vunpack.c.l.b16 %v54
  %v391 = vunpack.c.l.b16 %v55
  %v392 = vunpack.c.l.b16 %v56
  %v393 = vunpack.c.l.b16 %v57
  %v394 = vunpack.c.l.b16 %v58
  %v395 = vunpack.c.l.b16 %v59
  %v396 = vunpack.c.l.b16 %v60
  %v397 = vunpack.c.l.b16 %v61
  %v398 = vunpack.c.l.b16 %v62
  %v399 = vunpack.c.l.b16 %v63
  %v400 = vunpack.c.l.b16 %v64
  %v401 = vunpack.c.l.b16 %v65
  %v402 = vunpack.c.l.b16 %v66
  %v403 = vunpack.c.l.b16 %v67
  %v404 = vunpack.c.l.b16 %v68
  %v405 = vunpack.c.l.b16 %v69
  %v406 = vunpack.c.l.b16 %v70
  %v407 = vunpack.c.l.b16 %v71
  %v408 = vunpack.c.l.b16 %v72
  %v409 = vunpack.c.l.b16 %v73
  %v410 = vunpack.c.l.b16 %v74
  %v411 = vunpack.c.l.b16 %v75
  %v412 = vunpack.c.l.b16 %v76
  %v413 = vunpack.c.l.b16 %v77
  %v414 = vunpack.c.l.b16 %v78
  %v415 = vunpack.c.l.b16 %v79
  %v416 = vunpack.c.l.b16 %v80
  %v417 = vunpack.c.l.b16 %v81
  %v418 = vunpack.c.l.b16 %v82
  %v419 = vunpack.c.l.b16 %v83
  %v420 = vunpack.c.l.b16 %v84
  %v421 = vunpack.c.l.b16 %v85
  %v422 = vunpack.c.l.b16 %v86
  %v423 = vunpack.c.l.b16 %v87
  %v424 = vunpack.c.l.b16 %v88
  %v425 = vunpack.c.l.b16 %v89
  %v426 = vunpack.c.l.b16 %v90
  %v427 = vunpack.c.l.b16 %v91
  %v428 = vunpack.c.l.b16 %v92
  %v429 = vunpack.c.l.b16 %v93
  %v430 = vunpack.c.l.b16 %v94
  %v431 = vunpack.c.l.b16 %v95
  %v432 = vunpack.c.l.b16 %v96
  %v433 = vunpack.c.l.b16 %v97
  %v434 = vunpack.c.l.b16 %v98
  %v435 = vunpack.c.l.b16 %v99
  %v436 = vunpack.c.l.b16 %v100
  %v437 = vunpack.c.l.b16 %v101
  %v438 = vunpack.c.l.b16 %v102
  %v439 = vunpack.c.l.b16 %v103
  %v440 = vunpack.c.l.b16 %v104
  %v441 = vunpack.c.l.b16 %v105
  %v442 = vunpack.c.l.b16 %v106
  %v443 = vunpack.c.l.b16 %v107
  %v444 = vunpack.c.l.b16 %v108
  %v445 = vunpack.c.l.b16 %v109
  %v446 = vunpack.c.l.b16 %v110
  %v447 = vunpack.c.l.b16 %v111
  %v448 = vunpack.c.l.b16 %v112
  %v449 = vunpack.c.l.b16 %v113
  %v450 = vunpack.c.l.b16 %v114
  %v451 = vunpack.c.l.b16 %v115
  %v452 = vunpack.c.l.b16 %v116
  %v453 = vunpack.c.l.b16 %v117
  %v454 = vunpack.c.l.b16 %v118
  %v455 = vunpack.c.l.b16 %v119
  %v456 = vunpack.c.l.b16 %v120
  %v457 = vunpack.c.l.b16 %v121
  %v458 = vunpack.c.l.b16 %v122
  %v459 = vunpack.c.l.b16 %v123
  %v460 = vunpack.c.l.b16 %v124
  %v461 = vunpack.c.l.b16 %v125
  %v462 = vunpack.c.l.b16 %v126
  %v463 = vunpack.c.l.b16 %v127
  %v464 = vunpack.c.l.b16 %v128
  %v465 = vunpack.c.l.b16 %v129
  %v466 = vunpack.c.l.b16 %v130
  %v467 = vunpack.c.l.b16 %v131
  %v468 = vunpack.c.l.b16 %v132
  %v469 = vunpack.c.l.b16 %v133
  %v470 = vunpack.c.l.b16 %v134
  %v471 = vunpack.c.l.b16 %v135
  %v472 = vunpack.c.l.b16 %v136
  %v473 = vunpack.c.l.b16 %v137
  %v474 = vunpack.c.l.b16 %v138
  %v475 = vunpack.c.l.b16 %v139
  %v476 = vunpack.c.l.b16 %v140
  %v477 = vunpack.c.l.b16 %v141
  %v478 = vunpack.c.l.b16 %v142
  %v479 = vunpack.c.l.b16 %v143
  %v480 = vunpack.c.l.b16 %v144
  %v481 = vunpack.c.l.b16 %v145
  %v482 = vunpack.c.l.b16 %v146
  %v483 = vunpack.c.l.b16 %v147
  %v484 = vunpack.c.l.b16 %v148
  %v485 = vunpack.c.l.b16 %v149
  %v486 = vunpack.c.l.b16 %v150
  %v487 = vunpack.c.l.b16 %v151
  %v488 = vunpack.c.l.b16 %v152
  %v489 = vunpack.c.l.b16 %v153
  %v490 = vunpack.c.l.b16 %v154
  %v491 = vunpack.c.l.b16 %v155
  %v492 = vunpack.c.l.b16 %v156
  %v493 = vunpack.c.l.b16 %v157
  %v494 = vunpack.c.l.b16 %v158
  %v495 = vunpack.c.l.b16 %v159
  %v496 = vunpack.c.l.b16 %v160
  %v497 = vunpack.c.l.b16 %v161
  %v498 = vunpack.c.l.b16 %v162
  %v499 = vunpack.c.l.b16 %v163
  %v500 = vunpack.c.l.b16 %v164
  %v501 = vunpack.c.l.b16 %v165
  %v502 = vunpack.c.l.b16 %v166
  %v503 = vunpack.c.l.b16 %v167
  %v504 = vunpack.c.l.b16 %v168
  %v505 = vunpack.c.l.b16 %v169
  %v506 = vpack.c.b16 %v379, %v378
  %v507 = vpack.c.b16 %v381, %v380
  %v508 = vpack.c.b16 %v383, %v382
  %v509 = vpack.c.b16 %v385, %v384
  %v510 = vpack.c.b16 %v387, %v386
  %v511 = vpack.c.b16 %v389, %v388
  %v512 = vpack.c.b16 %v391, %v390
  %v513 = vpack.c.b16 %v393, %v392
  %v514 = vpack.c.b16 %v395, %v394
  %v515 = vpack.c.b16 %v397, %v396
  %v516 = vpack.c.b16 %v399, %v398
  %v517 = vpack.c.b16 %v401, %v400
  %v518 = vpack.c.b16 %v403, %v402
  %v519 = vpack.c.b16 %v405, %v404
  %v520 = vpack.c.b16 %v407, %v406
  %v521 = vpack.c.b16 %v409, %v408
  %v522 = vpack.c.b16 %v411, %v410
  %v523 = vpack.c.b16 %v413, %v412
  %v524 = vpack.c.b16 %v415, %v414
  %v525 = vpack.c.b16 %v417, %v416
  %v526 = vpack.c.b16 %v419, %v418
  %v527 = vpack.c.b16 %v421, %v420
  %v528 = vpack.c.b16 %v423, %v422
  %v529 = vpack.c.b16 %v425, %v424
  %v530 = vpack.c.b16 %v427, %v426
  %v531 = vpack.c.b16 %v429, %v428
  %v532 = vpack.c.b16 %v431, %v430
  %v533 = vpack.c.b16 %v433, %v432
  %v534 = vpack.c.b16 %v435, %v434
  %v535 = vpack.c.b16 %v437, %v436
  %v536 = vpack.c.b16 %v439, %v438
  %v537 = vpack.c.b16 %v441, %v440
  %v538 = vpack.c.b16 %v443, %v442
  %v539 = vpack.c.b16 %v445, %v444
  %v540 = vpack.c.b16 %v447, %v446
  %v541 = vpack.c.b16 %v449, %v448
  %v542 = vpack.c.b16 %v451, %v450
  %v543 = vpack.c.b16 %v453, %v452
  %v544 = vpack.c.b16 %v455, %v454
  %v545 = vpack.c.b16 %v457, %v456
  %v546 = vpack.c.b16 %v459, %v458
  %v547 = vpack.c.b16 %v461, %v460
  %v548 = vpack.c.b16 %v463, %v462
  %v549 = vpack.c.b16 %v465, %v464
  %v550 = vpack.c.b16 %v467, %v466
  %v551 = vpack.c.b16 %v469, %v468
  %v552 = vpack.c.b16 %v471, %v470
  %v553 = vpack.c.b16 %v473, %v472
  %v554 = vpack.c.b16 %v475, %v474
  %v555 = vpack.c.b16 %v477, %v476
  %v556 = vpack.c.b16 %v479, %v478
  %v557 = vpack.c.b16 %v481, %v480
  %v558 = vpack.c.b16 %v483, %v482
  %v559 = vpack.c.b16 %v485, %v484
  %v560 = vpack.c.b16 %v487, %v486
  %v561 = vpack.c.b16 %v489, %v488
  %v562 = vpack.c.b16 %v491, %v490
  %v563 = vpack.c.b16 %v493, %v492
  %v564 = vpack.c.b16 %v495, %v494
  %v565 = vpack.c.b16 %v497, %v496
  %v566 = vpack.c.b16 %v499, %v498
  %v567 = vpack.c.b16 %v501, %v500
  %v568 = vpack.c.b16 %v503, %v502
  %v569 = vpack.c.b16 %v505, %v504
  %634 = vmatprep.subr.bf16.mxu0 0
  %635 = vmatpush1.bf16.msra.mxu0 %v513
  %636 = vmatprep.subr.bf16.mxu0 0
  %637 = vmatpush1.bf16.msra.mxu0 %v512
  %638 = vmatprep.subr.bf16.mxu0 0
  %639 = vmatpush1.bf16.msra.mxu0 %v511
  %640 = vmatprep.subr.bf16.mxu0 0
  %641 = vmatpush1.bf16.msra.mxu0 %v510
  %642 = vmatprep.subr.bf16.mxu0 0
  %643 = vmatpush1.bf16.msra.mxu0 %v509
  %644 = vmatprep.subr.bf16.mxu0 0
  %645 = vmatpush1.bf16.msra.mxu0 %v508
  %646 = vmatprep.subr.bf16.mxu0 0
  %647 = vmatpush1.bf16.msra.mxu0 %v507
  %648 = vmatprep.subr.bf16.mxu0 0
  %649 = vmatpush1.bf16.msra.mxu0 %v506
  %650 = vmatprep.subr.bf16.mxu0 0
  %651 = vmatpush2.bf16.msra.mxu0 %v521
  %652 = vmatprep.subr.bf16.mxu0 0
  %653 = vmatpush2.bf16.msra.mxu0 %v520
  %654 = vmatprep.subr.bf16.mxu0 0
  %655 = vmatpush2.bf16.msra.mxu0 %v519
  %656 = vmatprep.subr.bf16.mxu0 0
  %657 = vmatpush2.bf16.msra.mxu0 %v518
  %658 = vmatprep.subr.bf16.mxu0 0
  %659 = vmatpush2.bf16.msra.mxu0 %v517
  %660 = vmatprep.subr.bf16.mxu0 0
  %661 = vmatpush2.bf16.msra.mxu0 %v516
  %662 = vmatprep.subr.bf16.mxu0 0
  %663 = vmatpush2.bf16.msra.mxu0 %v515
  %664 = vmatprep.subr.bf16.mxu0 0
  %665 = vmatpush2.bf16.msra.mxu0 %v514
  %666 = vmatprep.mubr.bf16.mxu0 %v219
  %667 = vmatmul.mubr.bf16.gmra.mxu0 %v218
  %v668 = vpop.f32.mrf.mxu0
  %v669 = vadd.f32 0.0, %v668
  %v670 = vpop.f32.mrf.mxu0
  %v671 = vpop.f32.mrf.mxu0
  %v672 = vadd.f32 0.0, %v671
  %v673 = vpop.f32.mrf.mxu0
  %674 = vmatprep.mubr.bf16.mxu0 %v227
  %675 = vmatmul.mubr.bf16.gmra.mxu0 %v226
  %v676 = vpop.f32.mrf.mxu0
  %v677 = vadd.f32 0.0, %v676
  %v678 = vpop.f32.mrf.mxu0
  %v679 = vpop.f32.mrf.mxu0
  %v680 = vadd.f32 0.0, %v679
  %v681 = vpop.f32.mrf.mxu0
  %682 = vdwg.mxu0
  %683 = vmatprep.subr.bf16.mxu0 0
  %684 = vmatpush1.bf16.msra.mxu0 %v529
  %685 = vmatprep.subr.bf16.mxu0 0
  %686 = vmatpush1.bf16.msra.mxu0 %v528
  %687 = vmatprep.subr.bf16.mxu0 0
  %688 = vmatpush1.bf16.msra.mxu0 %v527
  %689 = vmatprep.subr.bf16.mxu0 0
  %690 = vmatpush1.bf16.msra.mxu0 %v526
  %691 = vmatprep.subr.bf16.mxu0 0
  %692 = vmatpush1.bf16.msra.mxu0 %v525
  %693 = vmatprep.subr.bf16.mxu0 0
  %694 = vmatpush1.bf16.msra.mxu0 %v524
  %695 = vmatprep.subr.bf16.mxu0 0
  %696 = vmatpush1.bf16.msra.mxu0 %v523
  %697 = vmatprep.subr.bf16.mxu0 0
  %698 = vmatpush1.bf16.msra.mxu0 %v522
  %699 = vmatprep.subr.bf16.mxu0 0
  %700 = vmatpush2.bf16.msra.mxu0 %v537
  %701 = vmatprep.subr.bf16.mxu0 0
  %702 = vmatpush2.bf16.msra.mxu0 %v536
  %703 = vmatprep.subr.bf16.mxu0 0
  %704 = vmatpush2.bf16.msra.mxu0 %v535
  %705 = vmatprep.subr.bf16.mxu0 0
  %706 = vmatpush2.bf16.msra.mxu0 %v534
  %707 = vmatprep.subr.bf16.mxu0 0
  %708 = vmatpush2.bf16.msra.mxu0 %v533
  %709 = vmatprep.subr.bf16.mxu0 0
  %710 = vmatpush2.bf16.msra.mxu0 %v532
  %711 = vmatprep.subr.bf16.mxu0 0
  %712 = vmatpush2.bf16.msra.mxu0 %v531
  %713 = vmatprep.subr.bf16.mxu0 0
  %714 = vmatpush2.bf16.msra.mxu0 %v530
  %715 = vmatprep.mubr.bf16.mxu0 %v221
  %716 = vmatmul.mubr.bf16.gmra.mxu0 %v220
  %v717 = vpop.f32.mrf.mxu0
  %v718 = vadd.f32 %v669, %v717
  %v719 = vpop.f32.mrf.mxu0
  %v720 = vpop.f32.mrf.mxu0
  %v721 = vadd.f32 %v672, %v720
  %v722 = vpop.f32.mrf.mxu0
  %723 = vmatprep.mubr.bf16.mxu0 %v229
  %724 = vmatmul.mubr.bf16.gmra.mxu0 %v228
  %v725 = vpop.f32.mrf.mxu0
  %v726 = vadd.f32 %v677, %v725
  %v727 = vpop.f32.mrf.mxu0
  %v728 = vpop.f32.mrf.mxu0
  %v729 = vadd.f32 %v680, %v728
  %v730 = vpop.f32.mrf.mxu0
  %731 = vdwg.mxu0
  %732 = vmatprep.subr.bf16.mxu0 0
  %733 = vmatpush1.bf16.msra.mxu0 %v545
  %734 = vmatprep.subr.bf16.mxu0 0
  %735 = vmatpush1.bf16.msra.mxu0 %v544
  %736 = vmatprep.subr.bf16.mxu0 0
  %737 = vmatpush1.bf16.msra.mxu0 %v543
  %738 = vmatprep.subr.bf16.mxu0 0
  %739 = vmatpush1.bf16.msra.mxu0 %v542
  %740 = vmatprep.subr.bf16.mxu0 0
  %741 = vmatpush1.bf16.msra.mxu0 %v541
  %742 = vmatprep.subr.bf16.mxu0 0
  %743 = vmatpush1.bf16.msra.mxu0 %v540
  %744 = vmatprep.subr.bf16.mxu0 0
  %745 = vmatpush1.bf16.msra.mxu0 %v539
  %746 = vmatprep.subr.bf16.mxu0 0
  %747 = vmatpush1.bf16.msra.mxu0 %v538
  %748 = vmatprep.subr.bf16.mxu0 0
  %749 = vmatpush2.bf16.msra.mxu0 %v553
  %750 = vmatprep.subr.bf16.mxu0 0
  %751 = vmatpush2.bf16.msra.mxu0 %v552
  %752 = vmatprep.subr.bf16.mxu0 0
  %753 = vmatpush2.bf16.msra.mxu0 %v551
  %754 = vmatprep.subr.bf16.mxu0 0
  %755 = vmatpush2.bf16.msra.mxu0 %v550
  %756 = vmatprep.subr.bf16.mxu0 0
  %757 = vmatpush2.bf16.msra.mxu0 %v549
  %758 = vmatprep.subr.bf16.mxu0 0
  %759 = vmatpush2.bf16.msra.mxu0 %v548
  %760 = vmatprep.subr.bf16.mxu0 0
  %761 = vmatpush2.bf16.msra.mxu0 %v547
  %762 = vmatprep.subr.bf16.mxu0 0
  %763 = vmatpush2.bf16.msra.mxu0 %v546
  %764 = vmatprep.mubr.bf16.mxu0 %v223
  %765 = vmatmul.mubr.bf16.gmra.mxu0 %v222
  %v766 = vpop.f32.mrf.mxu0
  %v767 = vadd.f32 %v718, %v766
  %v768 = vpop.f32.mrf.mxu0
  %v769 = vpop.f32.mrf.mxu0
  %v770 = vadd.f32 %v721, %v769
  %v771 = vpop.f32.mrf.mxu0
  %772 = vmatprep.mubr.bf16.mxu0 %v231
  %773 = vmatmul.mubr.bf16.gmra.mxu0 %v230
  %v774 = vpop.f32.mrf.mxu0
  %v775 = vadd.f32 %v726, %v774
  %v776 = vpop.f32.mrf.mxu0
  %v777 = vpop.f32.mrf.mxu0
  %v778 = vadd.f32 %v729, %v777
  %v779 = vpop.f32.mrf.mxu0
  %780 = vdwg.mxu0
  %781 = vmatprep.subr.bf16.mxu0 0
  %782 = vmatpush1.bf16.msra.mxu0 %v561
  %783 = vmatprep.subr.bf16.mxu0 0
  %784 = vmatpush1.bf16.msra.mxu0 %v560
  %785 = vmatprep.subr.bf16.mxu0 0
  %786 = vmatpush1.bf16.msra.mxu0 %v559
  %787 = vmatprep.subr.bf16.mxu0 0
  %788 = vmatpush1.bf16.msra.mxu0 %v558
  %789 = vmatprep.subr.bf16.mxu0 0
  %790 = vmatpush1.bf16.msra.mxu0 %v557
  %791 = vmatprep.subr.bf16.mxu0 0
  %792 = vmatpush1.bf16.msra.mxu0 %v556
  %793 = vmatprep.subr.bf16.mxu0 0
  %794 = vmatpush1.bf16.msra.mxu0 %v555
  %795 = vmatprep.subr.bf16.mxu0 0
  %796 = vmatpush1.bf16.msra.mxu0 %v554
  %797 = vmatprep.subr.bf16.mxu0 0
  %798 = vmatpush2.bf16.msra.mxu0 %v569
  %799 = vmatprep.subr.bf16.mxu0 0
  %800 = vmatpush2.bf16.msra.mxu0 %v568
  %801 = vmatprep.subr.bf16.mxu0 0
  %802 = vmatpush2.bf16.msra.mxu0 %v567
  %803 = vmatprep.subr.bf16.mxu0 0
  %804 = vmatpush2.bf16.msra.mxu0 %v566
  %805 = vmatprep.subr.bf16.mxu0 0
  %806 = vmatpush2.bf16.msra.mxu0 %v565
  %807 = vmatprep.subr.bf16.mxu0 0
  %808 = vmatpush2.bf16.msra.mxu0 %v564
  %809 = vmatprep.subr.bf16.mxu0 0
  %810 = vmatpush2.bf16.msra.mxu0 %v563
  %811 = vmatprep.subr.bf16.mxu0 0
  %812 = vmatpush2.bf16.msra.mxu0 %v562
  %813 = vmatprep.mubr.bf16.mxu0 %v225
  %814 = vmatmul.mubr.bf16.gmra.mxu0 %v224
  %v815 = vpop.f32.mrf.mxu0
  %v816 = vadd.f32 %v767, %v815
  %v817 = vpop.f32.mrf.mxu0
  %v818 = vpop.f32.mrf.mxu0
  %v819 = vadd.f32 %v770, %v818
  %v820 = vpop.f32.mrf.mxu0
  %821 = vmatprep.mubr.bf16.mxu0 %v233
  %822 = vmatmul.mubr.bf16.gmra.mxu0 %v232
  %v823 = vpop.f32.mrf.mxu0
  %v824 = vadd.f32 %v775, %v823
  %v825 = vpop.f32.mrf.mxu0
  %v826 = vpop.f32.mrf.mxu0
  %v827 = vadd.f32 %v778, %v826
  %v828 = vpop.f32.mrf.mxu0
  %829 = vdwg.mxu0
  %v830 = vadd.f32 %v22, %v816
  %v831 = vadd.f32 %v23, %v819
  %v832 = vadd.f32 %v24, %v824
  %v833 = vadd.f32 %v25, %v827
  %834 = vst [vmem:[%s2] sm:$0xff] %v830
  %835 = vst [vmem:[%s2 + $0x8] sm:$0xff] %v831
  %836 = vst [vmem:[%s2 + $0x10] sm:$0xff] %v832
  %837 = vst [vmem:[%s2 + $0x18] sm:$0xff] %v833
  // Predicated region
  $region14: #{_contrast_forward_impl.1} parent=0 // pred_check
    %p838 = pneg %p14
  $region15: #{_contrast_forward_impl.1} parent=0 // pred_check_branch
    %840 = sbr.rel (%p838) target = $region17
  $region16: #{_contrast_forward_impl.1} parent=0 // pred_region
    %v841 = vld [vmem:[%s2] sm:$0xff]
    %v842 = vld [vmem:[%s2 + $0x8] sm:$0xff]
    %v843 = vld [vmem:[%s2 + $0x10] sm:$0xff]
    %v844 = vld [vmem:[%s2 + $0x18] sm:$0xff]
    %v845 = vlaneseq
    %v846 = vand.u32 %v845, 127
    %vm847 = vcmp.lt.s32.totalorder %v846, 32
    %v848 = vsel %vm847, %v841, 0.0
    %v849 = vsel %vm847, %v842, 0.0
    %v850 = vsel %vm847, %v843, 0.0
    %v851 = vsel %vm847, %v844, 0.0
    %v852 = vmul.f32 %v848, %v848
    %v853 = vmul.f32 %v849, %v849
    %854 = vadd.xlane.f32.xlu0 %v852
    %v855 = vpop.xlane.xlu0 %854
    %856 = vadd.xlane.f32.xlu0 %v853
    %v857 = vpop.xlane.xlu0 %856
    %v858 = vmul.f32 %v850, %v850
    %v859 = vmul.f32 %v851, %v851
    %860 = vadd.xlane.f32.xlu0 %v858
    %v861 = vpop.xlane.xlu0 %860
    %862 = vadd.xlane.f32.xlu0 %v859
    %v863 = vpop.xlane.xlu0 %862
    %v864 = vmax.f32 %v855, 1e-24
    %v865 = vmax.f32 %v857, 1e-24
    %v866 = vrsqrt.pop %v864
    %v867 = vrsqrt.pop %v865
    %v868 = vmul.f32 %v866, 14.285714
    %v869 = vmul.f32 %v867, 14.285714
    %v870 = vmax.f32 %v861, 1e-24
    %v871 = vmax.f32 %v863, 1e-24
    %v872 = vrsqrt.pop %v870
    %v873 = vrsqrt.pop %v871
    %v874 = vmul.f32 %v848, %v868
    %v875 = vmul.f32 %v849, %v869
    %v876 = vpack.c.bf16 %v875, %v874
    %v877 = vmul.f32 %v850, %v872
    %v878 = vmul.f32 %v851, %v873
    %v879 = vpack.c.bf16 %v878, %v877
    %880 = vmatprep.subr.bf16.mxu0 0
    %881 = vmatpush1.bf16.xpose.msra.mxu0 0
    %882 = vmatprep.subr.bf16.mxu0 0
    %883 = vmatpush1.bf16.xpose.msra.mxu0 0
    %884 = vmatprep.subr.bf16.mxu0 0
    %885 = vmatpush1.bf16.xpose.msra.mxu0 0
    %886 = vmatprep.subr.bf16.mxu0 0
    %887 = vmatpush1.bf16.xpose.msra.mxu0 0
    %888 = vmatprep.subr.bf16.mxu0 0
    %889 = vmatpush1.bf16.xpose.msra.mxu0 0
    %890 = vmatprep.subr.bf16.mxu0 0
    %891 = vmatpush1.bf16.xpose.msra.mxu0 0
    %892 = vmatprep.subr.bf16.mxu0 0
    %893 = vmatpush1.bf16.xpose.msra.mxu0 0
    %894 = vmatprep.subr.bf16.mxu0 0
    %895 = vmatpush1.bf16.xpose.msra.mxu0 %v879
    %896 = vmatprep.subr.bf16.mxu0 0
    %897 = vmatpush2.bf16.xpose.msra.mxu0 0
    %898 = vmatprep.subr.bf16.mxu0 0
    %899 = vmatpush2.bf16.xpose.msra.mxu0 0
    %900 = vmatprep.subr.bf16.mxu0 0
    %901 = vmatpush2.bf16.xpose.msra.mxu0 0
    %902 = vmatprep.subr.bf16.mxu0 0
    %903 = vmatpush2.bf16.xpose.msra.mxu0 0
    %904 = vmatprep.subr.bf16.mxu0 0
    %905 = vmatpush2.bf16.xpose.msra.mxu0 0
    %906 = vmatprep.subr.bf16.mxu0 0
    %907 = vmatpush2.bf16.xpose.msra.mxu0 0
    %908 = vmatprep.subr.bf16.mxu0 0
    %909 = vmatpush2.bf16.xpose.msra.mxu0 0
    %910 = vmatprep.subr.bf16.mxu0 0
    %911 = vmatpush2.bf16.xpose.msra.mxu0 0
    %912 = vmatprep.mubr.bf16.mxu0 0
    %913 = vmatmul.mubr.bf16.gmra.mxu0 %v876
    %v914 = vpop.f32.mrf.mxu0
    %v915 = vadd.f32 0.0, %v914
    %v916 = vpop.f32.mrf.mxu0
    %v917 = vpop.f32.mrf.mxu0
    %v918 = vadd.f32 0.0, %v917
    %v919 = vpop.f32.mrf.mxu0
    %920 = vdwg.mxu0
    %921 = vst [vmem:[%s3] sm:$0xff] %v915
    %922 = vst [vmem:[%s3 + $0x8] sm:$0xff] %v918
  $region17: #{_contrast_forward_impl.1} parent=0 // pred_fallthru
    _
  // Predicated region
  $region18: #{_contrast_forward_impl.1} parent=0 // pred_check
    _
  $region19: #{_contrast_forward_impl.1} parent=0 // pred_check_branch
    %924 = sbr.rel (0) target = $region21
  $region20: #{_contrast_forward_impl.1} parent=0 // pred_region
    _
  $region21: #{_contrast_forward_impl.1} parent=0 // pred_fallthru
    _
  // Predicated region
  $region22: #{_contrast_forward_impl.1} parent=0 // pred_check
    _
  $region23: #{_contrast_forward_impl.1} parent=0 // pred_check_branch
    %926 = sbr.rel (0) target = $region25
  $region24: #{_contrast_forward_impl.1} parent=0 // pred_region
    _
  $region25: #{_contrast_forward_impl.1} parent=0 // pred_fallthru
    _
  // Predicated region
  $region26: #{_contrast_forward_impl.1} parent=0 // pred_check
    _
  $region27: #{_contrast_forward_impl.1} parent=0 // pred_check_branch
    %928 = sbr.rel (0) target = $region29
  $region28: #{_contrast_forward_impl.1} parent=0 // pred_region
    _
  $region29: #{_contrast_forward_impl.1} parent=0 // pred_fallthru
    _
  // Predicated region
  $region30: #{_contrast_forward_impl.1} parent=0 // pred_check
    _
  $region31: #{_contrast_forward_impl.1} parent=0 // pred_check_branch
    %930 = sbr.rel (0) target = $region33
  $region32: #{_contrast_forward_impl.1} parent=0 // pred_region
    _
  $region33: #{_contrast_forward_impl.1} parent=0 // pred_fallthru
    _

</llo_original>
